<compile_context>
chip_gen: v7x
topology: tpu7x:2x2x1
jax: 0.10.0
libtpu: 0.0.40
codegen_flags: <defaults>
</compile_context>

<pallas_src>
import jax
import jax.numpy as jnp
from jax.experimental import pallas as pl
from jax.experimental.pallas import tpu as pltpu

LATENT_DIMS = 5
DIMS = [LATENT_DIMS, 128, 80, 64, 16, 4]
LANES = 128
TILE_B_MAX = 2048   # lane-axis tile; working set at 2048 is ~5 MiB -> fits everywhere


def _round_up(n, m):
    return ((n + m - 1) // m) * m


def _batch_dim_semantics(num_tiles):
    """CORE_PARALLEL actually shards grid steps across v7x's two TensorCores;
    plain "parallel" vs "arbitrary" barely changes codegen, so only opt in on v7."""
    try:
        kind = jax.devices()[0].device_kind.lower()
    except Exception:
        kind = ""
    if "v7" in kind and num_tiles >= 2 and num_tiles % 2 == 0:
        return (pltpu.CORE_PARALLEL,)
    return ("parallel",)


def _dnn_kernel(x_ref,
                w1_ref, b1_ref,
                w2_ref, b2_ref,
                w3_ref, b3_ref,
                w4_ref, b4_ref,
                w5_ref, b5_ref,
                o_ref):
    # All tensors are batch-on-lanes: activations are (features, TILE_B),
    # weights are stored transposed (out, in).
    def dense(w_ref, h, b_ref):
        # bf16 MXU operands, f32 accumulation; bias add stays f32 (VPU).
        return (jnp.dot(w_ref[...], h, preferred_element_type=jnp.float32)
                + b_ref[...])

    def dense_relu(w_ref, h, b_ref):
        # ReLU in f32 (v5e has no bf16 VPU), then cast once so the carried
        # activation is bf16 (halves vreg/VMEM traffic, feeds MXU directly).
        return jnp.maximum(dense(w_ref, h, b_ref), 0.0).astype(jnp.bfloat16)

    h = x_ref[...]                        # (5, TILE_B) bf16
    h = dense_relu(w1_ref, h, b1_ref)     # layer1 + ReLU
    h = dense_relu(w2_ref, h, b2_ref)     # layer2 + ReLU (+ dropout: identity in eval)
    h = dense_relu(w3_ref, h, b3_ref)     # layer3 + ReLU (+ dropout: identity in eval)
    h = dense_relu(w4_ref, h, b4_ref)     # layer4 + ReLU
    h = dense(w5_ref, h, b5_ref)          # layer_out, (4, TILE_B) f32
    o_ref[...] = jax.nn.sigmoid(h).astype(o_ref.dtype)   # sigmoid in f32 (EUP)


def dnn_forward(x, params, *, tile_b_max=TILE_B_MAX):
    """x: [B, 5] float32.  params: list of (Wt[out,in] bf16, b[out,1] f32).
    Returns [B, 4] float32."""
    B = x.shape[0]
    assert x.shape[1] == DIMS[0]

    # Balanced lane-axis tiling: minimize padding instead of rounding B up to
    # a multiple of tile_b_max.
    b_aligned = _round_up(B, LANES)
    num_tiles = pl.cdiv(b_aligned, tile_b_max)
    tile_b = _round_up(pl.cdiv(b_aligned, num_tiles), LANES)
    b_pad = num_tiles * tile_b

    # Batch-on-lanes layout: [5, b_pad] bf16 (lane-dense input DMA, half the
    # HBM read of f32).
    xt = x.astype(jnp.bfloat16).T
    if b_pad != B:
        xt = jnp.pad(xt, ((0, 0), (0, b_pad - B)))

    flat = []
    # x/out tiles march along the lane axis with the grid; weights/biases use
    # constant index maps so their blocks stay VMEM-resident across all steps.
    in_specs = [pl.BlockSpec((DIMS[0], tile_b), lambda i: (0, i))]
    for (wt, b) in params:
        flat += [wt, b]
        in_specs += [pl.BlockSpec(wt.shape, lambda i: (0, 0)),
                     pl.BlockSpec(b.shape, lambda i: (0, 0))]

    flops_per_row = 2 * sum(DIMS[i] * DIMS[i + 1] for i in range(len(DIMS) - 1))
    weight_bytes = sum(int(wt.size) * wt.dtype.itemsize + int(b.size) * b.dtype.itemsize
                       for wt, b in params)
    cost = pl.CostEstimate(
        flops=flops_per_row * b_pad,
        transcendentals=DIMS[-1] * b_pad,                          # sigmoid
        bytes_accessed=b_pad * (DIMS[0] * 2 + DIMS[-1] * 4) + weight_bytes,
    )

    out_t = pl.pallas_call(
        _dnn_kernel,
        out_shape=jax.ShapeDtypeStruct((DIMS[-1], b_pad), jnp.float32),
        grid=(num_tiles,),
        in_specs=in_specs,
        out_specs=pl.BlockSpec((DIMS[-1], tile_b), lambda i: (0, i)),
        compiler_params=pltpu.CompilerParams(
            dimension_semantics=_batch_dim_semantics(num_tiles),
            # Explicit scoped-VMEM budget: covers tile_b up to 4096 with
            # double-buffered I/O on v5e's 16 MiB default and stays well under
            # v7x's 64 MiB physical / 32 MiB scoped per-TC VMEM.
            vmem_limit_bytes=32 * 1024 * 1024),
        cost_estimate=cost,
    )(xt, *flat)

    out = out_t.T                      # [b_pad, 4], lane-dense HBM writeback in-kernel
    return out[:B] if b_pad != B else out


def init_params(key, w_dtype=jnp.bfloat16):
    """Deterministic init mirroring nn.Linear; weights stored transposed (out, in)."""
    params = []
    for i in range(len(DIMS) - 1):
        fan_in, fan_out = DIMS[i], DIMS[i + 1]
        key, kw, kb = jax.random.split(key, 3)
        bound = 1.0 / (fan_in ** 0.5)
        wt = jax.random.uniform(kw, (fan_out, fan_in), jnp.float32, -bound, bound)
        b = jax.random.uniform(kb, (fan_out, 1), jnp.float32, -bound, bound)
        params.append((wt.astype(w_dtype), b))
    return params


def reference_forward(x, params):
    """Pure-JAX reference in conventional [B, F] orientation, matching the
    kernel's numerics (bf16 MXU operands, f32 accumulation, bf16 activations)."""
    h = x.astype(jnp.bfloat16)
    for i, (wt, b) in enumerate(params):
        z = jnp.dot(h, wt.T, preferred_element_type=jnp.float32) + b[:, 0]
        if i < len(params) - 1:
            h = jnp.maximum(z, 0.0).astype(jnp.bfloat16)
        else:
            h = jax.nn.sigmoid(z)
    return h


if __name__ == "__main__":
    key = jax.random.PRNGKey(0)
    kx1, kx2, kx3, kp = jax.random.split(key, 4)
    params = init_params(kp)

    # Case 1: tiny batch, single tile (aligned to 128 lanes).
    B = 8
    x = jax.random.normal(kx1, (B, LATENT_DIMS), jnp.float32)
    out = jax.block_until_ready(dnn_forward(x, params))
    ref = reference_forward(x, params)
    assert out.shape == (B, DIMS[-1]), out.shape
    assert jnp.allclose(out, ref, atol=1e-3, rtol=1e-3), "mismatch vs reference (B=8)"

    # Case 2: multi-tile grid + batch padding (forced small tile).
    B2 = 600
    x2 = jax.random.normal(kx2, (B2, LATENT_DIMS), jnp.float32)
    out2 = jax.block_until_ready(dnn_forward(x2, params, tile_b_max=256))
    ref2 = reference_forward(x2, params)
    assert out2.shape == (B2, DIMS[-1]), out2.shape
    assert jnp.allclose(out2, ref2, atol=1e-3, rtol=1e-3), "mismatch vs reference (B=600)"

    # Case 3: default (large) tile, even number of tiles (exercises the
    # CORE_PARALLEL path on v7x, plain "parallel" elsewhere).
    B3 = 2500
    x3 = jax.random.normal(kx3, (B3, LATENT_DIMS), jnp.float32)
    out3 = jax.block_until_ready(dnn_forward(x3, params))
    ref3 = reference_forward(x3, params)
    assert out3.shape == (B3, DIMS[-1]), out3.shape
    assert jnp.allclose(out3, ref3, atol=1e-3, rtol=1e-3), "mismatch vs reference (B=2500)"

    print("KERNEL_OK")
</pallas_src>

<mosaic_0001>
module attributes {stable_mosaic.version = 11 : i64} {
  func.func @_dnn_kernel(%arg0: i32, %arg1: memref<5x128xbf16, #tpu.memory_space<vmem>>, %arg2: memref<128x5xbf16, #tpu.memory_space<vmem>>, %arg3: memref<128x1xf32, #tpu.memory_space<vmem>>, %arg4: memref<80x128xbf16, #tpu.memory_space<vmem>>, %arg5: memref<80x1xf32, #tpu.memory_space<vmem>>, %arg6: memref<64x80xbf16, #tpu.memory_space<vmem>>, %arg7: memref<64x1xf32, #tpu.memory_space<vmem>>, %arg8: memref<16x64xbf16, #tpu.memory_space<vmem>>, %arg9: memref<16x1xf32, #tpu.memory_space<vmem>>, %arg10: memref<4x16xbf16, #tpu.memory_space<vmem>>, %arg11: memref<4x1xf32, #tpu.memory_space<vmem>>, %arg12: memref<4x128xf32, #tpu.memory_space<vmem>>) attributes {dimension_semantics = [#tpu.dimension_semantics<parallel>], iteration_bounds = array<i64: 1>, scalar_prefetch = 0 : i64, scratch_operands = 0 : i64, tpu.core_type = #tpu.core_type<tc>, window_params = [{transform_indices = @transform_0, window_bounds = array<i64: 5, 128>}, {pipeline_mode = #tpu.pipeline_mode<synchronous>, transform_indices = @transform_1, window_bounds = array<i64: 128, 5>}, {pipeline_mode = #tpu.pipeline_mode<synchronous>, transform_indices = @transform_2, window_bounds = array<i64: 128, 1>}, {pipeline_mode = #tpu.pipeline_mode<synchronous>, transform_indices = @transform_3, window_bounds = array<i64: 80, 128>}, {pipeline_mode = #tpu.pipeline_mode<synchronous>, transform_indices = @transform_4, window_bounds = array<i64: 80, 1>}, {pipeline_mode = #tpu.pipeline_mode<synchronous>, transform_indices = @transform_5, window_bounds = array<i64: 64, 80>}, {pipeline_mode = #tpu.pipeline_mode<synchronous>, transform_indices = @transform_6, window_bounds = array<i64: 64, 1>}, {pipeline_mode = #tpu.pipeline_mode<synchronous>, transform_indices = @transform_7, window_bounds = array<i64: 16, 64>}, {pipeline_mode = #tpu.pipeline_mode<synchronous>, transform_indices = @transform_8, window_bounds = array<i64: 16, 1>}, {pipeline_mode = #tpu.pipeline_mode<synchronous>, transform_indices = @transform_9, window_bounds = array<i64: 4, 16>}, {pipeline_mode = #tpu.pipeline_mode<synchronous>, transform_indices = @transform_10, window_bounds = array<i64: 4, 1>}, {transform_indices = @transform_11, window_bounds = array<i64: 4, 128>}]} {
    %c0 = arith.constant 0 : index
    %c0_0 = arith.constant 0 : index
    %0 = vector.load %arg1[%c0, %c0_0] : memref<5x128xbf16, #tpu.memory_space<vmem>>, vector<5x128xbf16>
    %c0_1 = arith.constant 0 : index
    %c0_2 = arith.constant 0 : index
    %1 = vector.load %arg2[%c0_1, %c0_2] : memref<128x5xbf16, #tpu.memory_space<vmem>>, vector<128x5xbf16>
    %cst = arith.constant dense<0.000000e+00> : vector<128x128xf32>
    %2 = tpu.matmul %1, %0, %cst {dimension_numbers = #tpu.dot_dimension_numbers<[1], [0], [0], [1], [0, 0, 1, 1], [], []>} : vector<128x5xbf16>, vector<5x128xbf16>, vector<128x128xf32> -> vector<128x128xf32>
    %c0_3 = arith.constant 0 : index
    %c0_4 = arith.constant 0 : index
    %3 = vector.load %arg3[%c0_3, %c0_4] : memref<128x1xf32, #tpu.memory_space<vmem>>, vector<128x1xf32>
    %4 = vector.broadcast %3 : vector<128x1xf32> to vector<128x128xf32>
    %5 = arith.addf %2, %4 : vector<128x128xf32>
    %cst_5 = arith.constant 0.000000e+00 : f32
    %6 = vector.broadcast %cst_5 : f32 to vector<128x128xf32>
    %7 = arith.maximumf %5, %6 : vector<128x128xf32>
    %8 = arith.truncf %7 : vector<128x128xf32> to vector<128x128xbf16>
    %c0_6 = arith.constant 0 : index
    %c0_7 = arith.constant 0 : index
    %9 = vector.load %arg4[%c0_6, %c0_7] : memref<80x128xbf16, #tpu.memory_space<vmem>>, vector<80x128xbf16>
    %cst_8 = arith.constant dense<0.000000e+00> : vector<80x128xf32>
    %10 = tpu.matmul %9, %8, %cst_8 {dimension_numbers = #tpu.dot_dimension_numbers<[1], [0], [0], [1], [0, 0, 1, 1], [], []>} : vector<80x128xbf16>, vector<128x128xbf16>, vector<80x128xf32> -> vector<80x128xf32>
    %c0_9 = arith.constant 0 : index
    %c0_10 = arith.constant 0 : index
    %11 = vector.load %arg5[%c0_9, %c0_10] : memref<80x1xf32, #tpu.memory_space<vmem>>, vector<80x1xf32>
    %12 = vector.broadcast %11 : vector<80x1xf32> to vector<80x128xf32>
    %13 = arith.addf %10, %12 : vector<80x128xf32>
    %cst_11 = arith.constant 0.000000e+00 : f32
    %14 = vector.broadcast %cst_11 : f32 to vector<80x128xf32>
    %15 = arith.maximumf %13, %14 : vector<80x128xf32>
    %16 = arith.truncf %15 : vector<80x128xf32> to vector<80x128xbf16>
    %c0_12 = arith.constant 0 : index
    %c0_13 = arith.constant 0 : index
    %17 = vector.load %arg6[%c0_12, %c0_13] : memref<64x80xbf16, #tpu.memory_space<vmem>>, vector<64x80xbf16>
    %cst_14 = arith.constant dense<0.000000e+00> : vector<64x128xf32>
    %18 = tpu.matmul %17, %16, %cst_14 {dimension_numbers = #tpu.dot_dimension_numbers<[1], [0], [0], [1], [0, 0, 1, 1], [], []>} : vector<64x80xbf16>, vector<80x128xbf16>, vector<64x128xf32> -> vector<64x128xf32>
    %c0_15 = arith.constant 0 : index
    %c0_16 = arith.constant 0 : index
    %19 = vector.load %arg7[%c0_15, %c0_16] : memref<64x1xf32, #tpu.memory_space<vmem>>, vector<64x1xf32>
    %20 = vector.broadcast %19 : vector<64x1xf32> to vector<64x128xf32>
    %21 = arith.addf %18, %20 : vector<64x128xf32>
    %cst_17 = arith.constant 0.000000e+00 : f32
    %22 = vector.broadcast %cst_17 : f32 to vector<64x128xf32>
    %23 = arith.maximumf %21, %22 : vector<64x128xf32>
    %24 = arith.truncf %23 : vector<64x128xf32> to vector<64x128xbf16>
    %c0_18 = arith.constant 0 : index
    %c0_19 = arith.constant 0 : index
    %25 = vector.load %arg8[%c0_18, %c0_19] : memref<16x64xbf16, #tpu.memory_space<vmem>>, vector<16x64xbf16>
    %cst_20 = arith.constant dense<0.000000e+00> : vector<16x128xf32>
    %26 = tpu.matmul %25, %24, %cst_20 {dimension_numbers = #tpu.dot_dimension_numbers<[1], [0], [0], [1], [0, 0, 1, 1], [], []>} : vector<16x64xbf16>, vector<64x128xbf16>, vector<16x128xf32> -> vector<16x128xf32>
    %c0_21 = arith.constant 0 : index
    %c0_22 = arith.constant 0 : index
    %27 = vector.load %arg9[%c0_21, %c0_22] : memref<16x1xf32, #tpu.memory_space<vmem>>, vector<16x1xf32>
    %28 = vector.broadcast %27 : vector<16x1xf32> to vector<16x128xf32>
    %29 = arith.addf %26, %28 : vector<16x128xf32>
    %cst_23 = arith.constant 0.000000e+00 : f32
    %30 = vector.broadcast %cst_23 : f32 to vector<16x128xf32>
    %31 = arith.maximumf %29, %30 : vector<16x128xf32>
    %32 = arith.truncf %31 : vector<16x128xf32> to vector<16x128xbf16>
    %c0_24 = arith.constant 0 : index
    %c0_25 = arith.constant 0 : index
    %33 = vector.load %arg10[%c0_24, %c0_25] : memref<4x16xbf16, #tpu.memory_space<vmem>>, vector<4x16xbf16>
    %cst_26 = arith.constant dense<0.000000e+00> : vector<4x128xf32>
    %34 = tpu.matmul %33, %32, %cst_26 {dimension_numbers = #tpu.dot_dimension_numbers<[1], [0], [0], [1], [0, 0, 1, 1], [], []>} : vector<4x16xbf16>, vector<16x128xbf16>, vector<4x128xf32> -> vector<4x128xf32>
    %c0_27 = arith.constant 0 : index
    %c0_28 = arith.constant 0 : index
    %35 = vector.load %arg11[%c0_27, %c0_28] : memref<4x1xf32, #tpu.memory_space<vmem>>, vector<4x1xf32>
    %36 = vector.broadcast %35 : vector<4x1xf32> to vector<4x128xf32>
    %37 = arith.addf %34, %36 : vector<4x128xf32>
    %38 = arith.negf %37 : vector<4x128xf32>
    %39 = math.exp %38 : vector<4x128xf32>
    %cst_29 = arith.constant 1.000000e+00 : f32
    %40 = vector.broadcast %cst_29 : f32 to vector<4x128xf32>
    %41 = arith.addf %40, %39 : vector<4x128xf32>
    %42 = arith.divf %40, %41 : vector<4x128xf32>
    %c0_30 = arith.constant 0 : index
    %c0_31 = arith.constant 0 : index
    %43 = vector.load %arg12[%c0_30, %c0_31] : memref<4x128xf32, #tpu.memory_space<vmem>>, vector<4x128xf32>
    tpu.vector_store %arg12[%c0_30, %c0_31], %42 {strides = array<i32>} : memref<4x128xf32, #tpu.memory_space<vmem>>, vector<4x128xf32>,
    return
  }
  func.func @transform_0(%arg0: i32) -> (i32, i32) {
    %c0_i32 = arith.constant 0 : i32
    %c0_i32_0 = arith.constant 0 : i32
    return %c0_i32, %arg0 : i32, i32
  }
  func.func @transform_1(%arg0: i32) -> (i32, i32) {
    %c0_i32 = arith.constant 0 : i32
    %c0_i32_0 = arith.constant 0 : i32
    %c0_i32_1 = arith.constant 0 : i32
    return %c0_i32, %c0_i32_0 : i32, i32
  }
  func.func @transform_2(%arg0: i32) -> (i32, i32) {
    %c0_i32 = arith.constant 0 : i32
    %c0_i32_0 = arith.constant 0 : i32
    %c0_i32_1 = arith.constant 0 : i32
    return %c0_i32, %c0_i32_0 : i32, i32
  }
  func.func @transform_3(%arg0: i32) -> (i32, i32) {
    %c0_i32 = arith.constant 0 : i32
    %c0_i32_0 = arith.constant 0 : i32
    %c0_i32_1 = arith.constant 0 : i32
    return %c0_i32, %c0_i32_0 : i32, i32
  }
  func.func @transform_4(%arg0: i32) -> (i32, i32) {
    %c0_i32 = arith.constant 0 : i32
    %c0_i32_0 = arith.constant 0 : i32
    %c0_i32_1 = arith.constant 0 : i32
    return %c0_i32, %c0_i32_0 : i32, i32
  }
  func.func @transform_5(%arg0: i32) -> (i32, i32) {
    %c0_i32 = arith.constant 0 : i32
    %c0_i32_0 = arith.constant 0 : i32
    %c0_i32_1 = arith.constant 0 : i32
    return %c0_i32, %c0_i32_0 : i32, i32
  }
  func.func @transform_6(%arg0: i32) -> (i32, i32) {
    %c0_i32 = arith.constant 0 : i32
    %c0_i32_0 = arith.constant 0 : i32
    %c0_i32_1 = arith.constant 0 : i32
    return %c0_i32, %c0_i32_0 : i32, i32
  }
  func.func @transform_7(%arg0: i32) -> (i32, i32) {
    %c0_i32 = arith.constant 0 : i32
    %c0_i32_0 = arith.constant 0 : i32
    %c0_i32_1 = arith.constant 0 : i32
    return %c0_i32, %c0_i32_0 : i32, i32
  }
  func.func @transform_8(%arg0: i32) -> (i32, i32) {
    %c0_i32 = arith.constant 0 : i32
    %c0_i32_0 = arith.constant 0 : i32
    %c0_i32_1 = arith.constant 0 : i32
    return %c0_i32, %c0_i32_0 : i32, i32
  }
  func.func @transform_9(%arg0: i32) -> (i32, i32) {
    %c0_i32 = arith.constant 0 : i32
    %c0_i32_0 = arith.constant 0 : i32
    %c0_i32_1 = arith.constant 0 : i32
    return %c0_i32, %c0_i32_0 : i32, i32
  }
  func.func @transform_10(%arg0: i32) -> (i32, i32) {
    %c0_i32 = arith.constant 0 : i32
    %c0_i32_0 = arith.constant 0 : i32
    %c0_i32_1 = arith.constant 0 : i32
    return %c0_i32, %c0_i32_0 : i32, i32
  }
  func.func @transform_11(%arg0: i32) -> (i32, i32) {
    %c0_i32 = arith.constant 0 : i32
    %c0_i32_0 = arith.constant 0 : i32
    return %c0_i32, %arg0 : i32, i32
  }
}

</mosaic_0001>

<llo_original>
// kernel: tpu_custom_call.1
$region0: #{tpu_custom_call.1}
  #allocation0 [shape = 'u32[]', space=smem, size = 0x4, offset = 0x4, fixed_abs, tag = 'smem constant byte address 0x4 - core index']
  #allocation1 [shape = 'u32[144,128]{1,0:T(1,128)}', space=vmem, size = 0x12000, scoped, tag = 'internal scratch']
  %s0 = inlined_call_operand.vmem [shape: bf16[5,128], index: 0, kind: input, shape index: {}]
  %s1 = inlined_call_operand.vmem [shape: bf16[128,5], index: 1, kind: input, shape index: {}]
  %s2 = inlined_call_operand.vmem [shape: f32[128,1], index: 2, kind: input, shape index: {}]
  %s3 = inlined_call_operand.vmem [shape: bf16[80,128], index: 3, kind: input, shape index: {}]
  %s4 = inlined_call_operand.vmem [shape: f32[80,1], index: 4, kind: input, shape index: {}]
  %s5 = inlined_call_operand.vmem [shape: bf16[64,80], index: 5, kind: input, shape index: {}]
  %s6 = inlined_call_operand.vmem [shape: f32[64,1], index: 6, kind: input, shape index: {}]
  %s7 = inlined_call_operand.vmem [shape: bf16[16,64], index: 7, kind: input, shape index: {}]
  %s8 = inlined_call_operand.vmem [shape: f32[16,1], index: 8, kind: input, shape index: {}]
  %s9 = inlined_call_operand.vmem [shape: bf16[4,16], index: 9, kind: input, shape index: {}]
  %s10 = inlined_call_operand.vmem [shape: f32[4,1], index: 10, kind: input, shape index: {}]
  %s11 = inlined_call_operand.hbm [shape: f32[4,128], index: 11, kind: output, shape index: {}]
  %s12 = sld [smem:[#allocation0]]
  $region54: #{tpu_custom_call.1} parent=0
    _
  %s14 = ssub.s32 1, %s12
  %s15 = scalar_select 0, %s14, %s12
  $region1: #{tpu_custom_call.1} parent=0
    #allocation2 [shape = 'u8[2048]{0}', space=vmem, size = 0x800, scoped, tag = 'output window, operand 0, single buffered']
    #allocation3 [shape = 's32[1]{0}', space=sflag, size = 0x4, scoped, tag = 'scoped memory for tpu_custom_call.1']
    %16 = vsyncpa [#allocation3], 0
    // Predicated region
    $region2: #{tpu_custom_call.1} parent=1 // pred_check
      _
    $region3: #{tpu_custom_call.1} parent=1 // pred_check_branch
      %18 = sbr.rel (0) target = $region5
    $region4: #{tpu_custom_call.1} parent=1 // pred_region
      _
    $region5: #{tpu_custom_call.1} parent=1 // pred_fallthru
      _
    // Predicated region
    $region6: #{tpu_custom_call.1} parent=1 // pred_check
      _
    $region7: #{tpu_custom_call.1} parent=1 // pred_check_branch
      %20 = sbr.rel (0) target = $region9
    $region8: #{tpu_custom_call.1} parent=1 // pred_region
      _
    $region9: #{tpu_custom_call.1} parent=1 // pred_fallthru
      _
    // Predicated region
    $region10: #{tpu_custom_call.1} parent=1 // pred_check
      _
    $region11: #{tpu_custom_call.1} parent=1 // pred_check_branch
      %22 = sbr.rel (0) target = $region13
    $region12: #{tpu_custom_call.1} parent=1 // pred_region
      _
    $region13: #{tpu_custom_call.1} parent=1 // pred_fallthru
      _
    // Predicated region
    $region14: #{tpu_custom_call.1} parent=1 // pred_check
      _
    $region15: #{tpu_custom_call.1} parent=1 // pred_check_branch
      %24 = sbr.rel (0) target = $region17
    $region16: #{tpu_custom_call.1} parent=1 // pred_region
      _
    $region17: #{tpu_custom_call.1} parent=1 // pred_fallthru
      _
    // Predicated region
    $region18: #{tpu_custom_call.1} parent=1 // pred_check
      _
    $region19: #{tpu_custom_call.1} parent=1 // pred_check_branch
      %26 = sbr.rel (0) target = $region21
    $region20: #{tpu_custom_call.1} parent=1 // pred_region
      _
    $region21: #{tpu_custom_call.1} parent=1 // pred_fallthru
      _
    // Predicated region
    $region22: #{tpu_custom_call.1} parent=1 // pred_check
      _
    $region23: #{tpu_custom_call.1} parent=1 // pred_check_branch
      %28 = sbr.rel (0) target = $region25
    $region24: #{tpu_custom_call.1} parent=1 // pred_region
      _
    $region25: #{tpu_custom_call.1} parent=1 // pred_fallthru
      _
    // Predicated region
    $region26: #{tpu_custom_call.1} parent=1 // pred_check
      _
    $region27: #{tpu_custom_call.1} parent=1 // pred_check_branch
      %30 = sbr.rel (0) target = $region29
    $region28: #{tpu_custom_call.1} parent=1 // pred_region
      _
    $region29: #{tpu_custom_call.1} parent=1 // pred_fallthru
      _
    // Predicated region
    $region30: #{tpu_custom_call.1} parent=1 // pred_check
      _
    $region31: #{tpu_custom_call.1} parent=1 // pred_check_branch
      %32 = sbr.rel (0) target = $region33
    $region32: #{tpu_custom_call.1} parent=1 // pred_region
      _
    $region33: #{tpu_custom_call.1} parent=1 // pred_fallthru
      _
    // Predicated region
    $region34: #{tpu_custom_call.1} parent=1 // pred_check
      _
    $region35: #{tpu_custom_call.1} parent=1 // pred_check_branch
      %34 = sbr.rel (0) target = $region37
    $region36: #{tpu_custom_call.1} parent=1 // pred_region
      _
    $region37: #{tpu_custom_call.1} parent=1 // pred_fallthru
      _
    // Predicated region
    $region38: #{tpu_custom_call.1} parent=1 // pred_check
      _
    $region39: #{tpu_custom_call.1} parent=1 // pred_check_branch
      %36 = sbr.rel (0) target = $region41
    $region40: #{tpu_custom_call.1} parent=1 // pred_region
      _
    $region41: #{tpu_custom_call.1} parent=1 // pred_fallthru
      _
    // Predicated region
    $region42: #{tpu_custom_call.1} parent=1 // pred_check
      _
    $region43: #{tpu_custom_call.1} parent=1 // pred_check_branch
      %38 = sbr.rel (0) target = $region45
    $region44: #{tpu_custom_call.1} parent=1 // pred_region
      _
    $region45: #{tpu_custom_call.1} parent=1 // pred_fallthru
      _
    %v40 = vld [vmem:[%s0] sm:$0x7]
    %v41 = vld [vmem:[%s1] sm:$0xf]
    %v42 = vld [vmem:[%s1 + $0x4] sm:$0xf]
    %v43 = vld [vmem:[%s1 + $0x8] sm:$0xf]
    %v44 = vld [vmem:[%s1 + $0xc] sm:$0xf]
    %v45 = vld [vmem:[%s1 + $0x10] sm:$0xf]
    %v46 = vld [vmem:[%s1 + $0x14] sm:$0xf]
    %v47 = vld [vmem:[%s1 + $0x18] sm:$0xf]
    %v48 = vld [vmem:[%s1 + $0x1c] sm:$0xf]
    %v49 = vld [vmem:[%s1 + $0x20] sm:$0xf]
    %v50 = vld [vmem:[%s1 + $0x24] sm:$0xf]
    %v51 = vld [vmem:[%s1 + $0x28] sm:$0xf]
    %v52 = vld [vmem:[%s1 + $0x2c] sm:$0xf]
    %v53 = vld [vmem:[%s1 + $0x30] sm:$0xf]
    %v54 = vld [vmem:[%s1 + $0x34] sm:$0xf]
    %v55 = vld [vmem:[%s1 + $0x38] sm:$0xf]
    %v56 = vld [vmem:[%s1 + $0x3c] sm:$0xf]
    %v57 = vld [vmem:[%s2] sm:$0xff]
    %v58 = vld [vmem:[%s2 + $0x8] sm:$0xff]
    %v59 = vld [vmem:[%s2 + $0x10] sm:$0xff]
    %v60 = vld [vmem:[%s2 + $0x18] sm:$0xff]
    %v61 = vld [vmem:[%s2 + $0x20] sm:$0xff]
    %v62 = vld [vmem:[%s2 + $0x28] sm:$0xff]
    %v63 = vld [vmem:[%s2 + $0x30] sm:$0xff]
    %v64 = vld [vmem:[%s2 + $0x38] sm:$0xff]
    %v65 = vld [vmem:[%s2 + $0x40] sm:$0xff]
    %v66 = vld [vmem:[%s2 + $0x48] sm:$0xff]
    %v67 = vld [vmem:[%s2 + $0x50] sm:$0xff]
    %v68 = vld [vmem:[%s2 + $0x58] sm:$0xff]
    %v69 = vld [vmem:[%s2 + $0x60] sm:$0xff]
    %v70 = vld [vmem:[%s2 + $0x68] sm:$0xff]
    %v71 = vld [vmem:[%s2 + $0x70] sm:$0xff]
    %v72 = vld [vmem:[%s2 + $0x78] sm:$0xff]
    %74 = vset.pattern.permute.xlu0 0
    %75 = vperm.xlu0 %74, %v57
    %v76 = vpop.permute.xlu0 %75
    %79 = vset.pattern.permute.xlu0 0
    %80 = vperm.xlu0 %79, %v58
    %v81 = vpop.permute.xlu0 %80
    %84 = vset.pattern.permute.xlu0 0
    %85 = vperm.xlu0 %84, %v59
    %v86 = vpop.permute.xlu0 %85
    %89 = vset.pattern.permute.xlu0 0
    %90 = vperm.xlu0 %89, %v60
    %v91 = vpop.permute.xlu0 %90
    %94 = vset.pattern.permute.xlu0 0
    %95 = vperm.xlu0 %94, %v61
    %v96 = vpop.permute.xlu0 %95
    %99 = vset.pattern.permute.xlu0 0
    %100 = vperm.xlu0 %99, %v62
    %v101 = vpop.permute.xlu0 %100
    %104 = vset.pattern.permute.xlu0 0
    %105 = vperm.xlu0 %104, %v63
    %v106 = vpop.permute.xlu0 %105
    %109 = vset.pattern.permute.xlu0 0
    %110 = vperm.xlu0 %109, %v64
    %v111 = vpop.permute.xlu0 %110
    %114 = vset.pattern.permute.xlu0 0
    %115 = vperm.xlu0 %114, %v65
    %v116 = vpop.permute.xlu0 %115
    %119 = vset.pattern.permute.xlu0 0
    %120 = vperm.xlu0 %119, %v66
    %v121 = vpop.permute.xlu0 %120
    %124 = vset.pattern.permute.xlu0 0
    %125 = vperm.xlu0 %124, %v67
    %v126 = vpop.permute.xlu0 %125
    %129 = vset.pattern.permute.xlu0 0
    %130 = vperm.xlu0 %129, %v68
    %v131 = vpop.permute.xlu0 %130
    %134 = vset.pattern.permute.xlu0 0
    %135 = vperm.xlu0 %134, %v69
    %v136 = vpop.permute.xlu0 %135
    %139 = vset.pattern.permute.xlu0 0
    %140 = vperm.xlu0 %139, %v70
    %v141 = vpop.permute.xlu0 %140
    %144 = vset.pattern.permute.xlu0 0
    %145 = vperm.xlu0 %144, %v71
    %v146 = vpop.permute.xlu0 %145
    %149 = vset.pattern.permute.xlu0 0
    %150 = vperm.xlu0 %149, %v72
    %v151 = vpop.permute.xlu0 %150
    %v169 = vunpack.c.l.b16 %v41
    %v170 = vunpack.c.l.b16 %v42
    %v171 = vunpack.c.l.b16 %v43
    %v172 = vunpack.c.l.b16 %v44
    %v173 = vunpack.c.l.b16 %v45
    %v174 = vunpack.c.l.b16 %v46
    %v175 = vunpack.c.l.b16 %v47
    %v176 = vunpack.c.l.b16 %v48
    %v177 = vunpack.c.l.b16 %v49
    %v178 = vunpack.c.l.b16 %v50
    %v179 = vunpack.c.l.b16 %v51
    %v180 = vunpack.c.l.b16 %v52
    %v181 = vunpack.c.l.b16 %v53
    %v182 = vunpack.c.l.b16 %v54
    %v183 = vunpack.c.l.b16 %v55
    %v184 = vunpack.c.l.b16 %v56
    %v185 = vpack.c.b16 %v170, %v169
    %v186 = vpack.c.b16 %v172, %v171
    %v187 = vpack.c.b16 %v174, %v173
    %v188 = vpack.c.b16 %v176, %v175
    %v189 = vpack.c.b16 %v178, %v177
    %v190 = vpack.c.b16 %v180, %v179
    %v191 = vpack.c.b16 %v182, %v181
    %v192 = vpack.c.b16 %v184, %v183
    %vm193 = vcmask 39936
    %v195 = vsel %vm193, %v185, 0
    %v198 = vsel %vm193, %v186, 0
    %v201 = vsel %vm193, %v187, 0
    %v204 = vsel %vm193, %v188, 0
    %v207 = vsel %vm193, %v189, 0
    %v210 = vsel %vm193, %v190, 0
    %v213 = vsel %vm193, %v191, 0
    %v216 = vsel %vm193, %v192, 0
    %vm218 = vcmask 1041408
    %vm219 = vcmask 1042432
    %v220 = vsel %vm218, 4294967295, 65535
    %v221 = vsel %vm219, %v220, 0
    %v223 = vand.u32 %v40, %v221
    %225 = vmatprep.subr.bf16.mxu0 0
    %226 = vmatpush1.bf16.msra.mxu0 %v223
    %227 = vmatprep.subr.bf16.mxu0 0
    %228 = vmatpush1.bf16.msra.mxu0 0
    %229 = vmatprep.subr.bf16.mxu0 0
    %230 = vmatpush1.bf16.msra.mxu0 0
    %231 = vmatprep.subr.bf16.mxu0 0
    %232 = vmatpush1.bf16.msra.mxu0 0
    %233 = vmatprep.subr.bf16.mxu0 0
    %234 = vmatpush1.bf16.msra.mxu0 0
    %235 = vmatprep.subr.bf16.mxu0 0
    %236 = vmatpush1.bf16.msra.mxu0 0
    %237 = vmatprep.subr.bf16.mxu0 0
    %238 = vmatpush1.bf16.msra.mxu0 0
    %239 = vmatprep.subr.bf16.mxu0 0
    %240 = vmatpush1.bf16.msra.mxu0 0
    %241 = vmatprep.subr.bf16.mxu0 0
    %242 = vmatpush1.bf16.msra.mxu0 0
    %243 = vmatprep.subr.bf16.mxu0 0
    %244 = vmatpush1.bf16.msra.mxu0 0
    %245 = vmatprep.subr.bf16.mxu0 0
    %246 = vmatpush1.bf16.msra.mxu0 0
    %247 = vmatprep.subr.bf16.mxu0 0
    %248 = vmatpush1.bf16.msra.mxu0 0
    %249 = vmatprep.subr.bf16.mxu0 0
    %250 = vmatpush1.bf16.msra.mxu0 0
    %251 = vmatprep.subr.bf16.mxu0 0
    %252 = vmatpush1.bf16.msra.mxu0 0
    %253 = vmatprep.subr.bf16.mxu0 0
    %254 = vmatpush1.bf16.msra.mxu0 0
    %255 = vmatprep.subr.bf16.mxu0 0
    %256 = vmatpush1.bf16.msra.mxu0 0
    %257 = vmatprep.mubr.bf16.mxu0 0
    %258 = vmatmul.mubr.bf16.gmra.mrb[0].mxu0 %v195
    %v259 = vpop.f32.mrb[0].mxu0
    %v260 = vadd.f32 %v76, %v259
    %v261 = vpop.f32.mrb[0].mxu0
    %v262 = vpop.f32.mrb[0].mxu0
    %v263 = vadd.f32 %v81, %v262
    %v264 = vpop.f32.mrb[0].mxu0
    %265 = vmatprep.mubr.bf16.mxu0 0
    %266 = vmatmul.mubr.bf16.gmra.mrb[0].mxu0 %v198
    %v267 = vpop.f32.mrb[0].mxu0
    %v268 = vadd.f32 %v86, %v267
    %v269 = vpop.f32.mrb[0].mxu0
    %v270 = vpop.f32.mrb[0].mxu0
    %v271 = vadd.f32 %v91, %v270
    %v272 = vpop.f32.mrb[0].mxu0
    %273 = vmatprep.mubr.bf16.mxu0 0
    %274 = vmatmul.mubr.bf16.gmra.mrb[0].mxu0 %v201
    %v275 = vpop.f32.mrb[0].mxu0
    %v276 = vadd.f32 %v96, %v275
    %v277 = vpop.f32.mrb[0].mxu0
    %v278 = vpop.f32.mrb[0].mxu0
    %v279 = vadd.f32 %v101, %v278
    %v280 = vpop.f32.mrb[0].mxu0
    %281 = vmatprep.mubr.bf16.mxu0 0
    %282 = vmatmul.mubr.bf16.gmra.mrb[0].mxu0 %v204
    %v283 = vpop.f32.mrb[0].mxu0
    %v284 = vadd.f32 %v106, %v283
    %v285 = vpop.f32.mrb[0].mxu0
    %v286 = vpop.f32.mrb[0].mxu0
    %v287 = vadd.f32 %v111, %v286
    %v288 = vpop.f32.mrb[0].mxu0
    %289 = vmatprep.mubr.bf16.mxu0 0
    %290 = vmatmul.mubr.bf16.gmra.mrb[0].mxu0 %v207
    %v291 = vpop.f32.mrb[0].mxu0
    %v292 = vadd.f32 %v116, %v291
    %v293 = vpop.f32.mrb[0].mxu0
    %v294 = vpop.f32.mrb[0].mxu0
    %v295 = vadd.f32 %v121, %v294
    %v296 = vpop.f32.mrb[0].mxu0
    %297 = vmatprep.mubr.bf16.mxu0 0
    %298 = vmatmul.mubr.bf16.gmra.mrb[0].mxu0 %v210
    %v299 = vpop.f32.mrb[0].mxu0
    %v300 = vadd.f32 %v126, %v299
    %v301 = vpop.f32.mrb[0].mxu0
    %v302 = vpop.f32.mrb[0].mxu0
    %v303 = vadd.f32 %v131, %v302
    %v304 = vpop.f32.mrb[0].mxu0
    %305 = vmatprep.mubr.bf16.mxu0 0
    %306 = vmatmul.mubr.bf16.gmra.mrb[0].mxu0 %v213
    %v307 = vpop.f32.mrb[0].mxu0
    %v308 = vadd.f32 %v136, %v307
    %v309 = vpop.f32.mrb[0].mxu0
    %v310 = vpop.f32.mrb[0].mxu0
    %v311 = vadd.f32 %v141, %v310
    %v312 = vpop.f32.mrb[0].mxu0
    %313 = vmatprep.mubr.bf16.mxu0 0
    %314 = vmatmul.mubr.bf16.gmra.mrb[0].mxu0 %v216
    %v315 = vpop.f32.mrb[0].mxu0
    %v316 = vadd.f32 %v146, %v315
    %v317 = vpop.f32.mrb[0].mxu0
    %v318 = vpop.f32.mrb[0].mxu0
    %v319 = vadd.f32 %v151, %v318
    %v320 = vpop.f32.mrb[0].mxu0
    %321 = vdwg.mxu0
    %v322 = vmax.f32 %v260, 0.0
    %v323 = vmax.f32 %v263, 0.0
    %v324 = vmax.f32 %v268, 0.0
    %v325 = vmax.f32 %v271, 0.0
    %v326 = vmax.f32 %v276, 0.0
    %v327 = vmax.f32 %v279, 0.0
    %v328 = vmax.f32 %v284, 0.0
    %v329 = vmax.f32 %v287, 0.0
    %v330 = vmax.f32 %v292, 0.0
    %v331 = vmax.f32 %v295, 0.0
    %v332 = vmax.f32 %v300, 0.0
    %v333 = vmax.f32 %v303, 0.0
    %v334 = vmax.f32 %v308, 0.0
    %v335 = vmax.f32 %v311, 0.0
    %v336 = vmax.f32 %v316, 0.0
    %v337 = vmax.f32 %v319, 0.0
    %v338 = vpack.c.bf16 %v323, %v322
    %v339 = vpack.c.bf16 %v325, %v324
    %v340 = vpack.c.bf16 %v327, %v326
    %v341 = vpack.c.bf16 %v329, %v328
    %v342 = vpack.c.bf16 %v331, %v330
    %v343 = vpack.c.bf16 %v333, %v332
    %v344 = vpack.c.bf16 %v335, %v334
    %v345 = vpack.c.bf16 %v337, %v336
    %v346 = vld [vmem:[%s3] sm:$0xf]
    %v347 = vld [vmem:[%s3 + $0x4] sm:$0xf]
    %v348 = vld [vmem:[%s3 + $0x8] sm:$0xf]
    %v349 = vld [vmem:[%s3 + $0xc] sm:$0xf]
    %v350 = vld [vmem:[%s3 + $0x10] sm:$0xf]
    %v351 = vld [vmem:[%s3 + $0x14] sm:$0xf]
    %v352 = vld [vmem:[%s3 + $0x18] sm:$0xf]
    %v353 = vld [vmem:[%s3 + $0x1c] sm:$0xf]
    %v354 = vld [vmem:[%s3 + $0x20] sm:$0xf]
    %v355 = vld [vmem:[%s3 + $0x24] sm:$0xf]
    %v356 = vld [vmem:[%s4] sm:$0xff]
    %v357 = vld [vmem:[%s4 + $0x8] sm:$0xff]
    %v358 = vld [vmem:[%s4 + $0x10] sm:$0xff]
    %v359 = vld [vmem:[%s4 + $0x18] sm:$0xff]
    %v360 = vld [vmem:[%s4 + $0x20] sm:$0xff]
    %v361 = vld [vmem:[%s4 + $0x28] sm:$0xff]
    %v362 = vld [vmem:[%s4 + $0x30] sm:$0xff]
    %v363 = vld [vmem:[%s4 + $0x38] sm:$0xff]
    %v364 = vld [vmem:[%s4 + $0x40] sm:$0xff]
    %v365 = vld [vmem:[%s4 + $0x48] sm:$0xff]
    %367 = vset.pattern.permute.xlu0 0
    %368 = vperm.xlu0 %367, %v356
    %v369 = vpop.permute.xlu0 %368
    %372 = vset.pattern.permute.xlu0 0
    %373 = vperm.xlu0 %372, %v357
    %v374 = vpop.permute.xlu0 %373
    %377 = vset.pattern.permute.xlu0 0
    %378 = vperm.xlu0 %377, %v358
    %v379 = vpop.permute.xlu0 %378
    %382 = vset.pattern.permute.xlu0 0
    %383 = vperm.xlu0 %382, %v359
    %v384 = vpop.permute.xlu0 %383
    %387 = vset.pattern.permute.xlu0 0
    %388 = vperm.xlu0 %387, %v360
    %v389 = vpop.permute.xlu0 %388
    %392 = vset.pattern.permute.xlu0 0
    %393 = vperm.xlu0 %392, %v361
    %v394 = vpop.permute.xlu0 %393
    %397 = vset.pattern.permute.xlu0 0
    %398 = vperm.xlu0 %397, %v362
    %v399 = vpop.permute.xlu0 %398
    %402 = vset.pattern.permute.xlu0 0
    %403 = vperm.xlu0 %402, %v363
    %v404 = vpop.permute.xlu0 %403
    %407 = vset.pattern.permute.xlu0 0
    %408 = vperm.xlu0 %407, %v364
    %v409 = vpop.permute.xlu0 %408
    %412 = vset.pattern.permute.xlu0 0
    %413 = vperm.xlu0 %412, %v365
    %v414 = vpop.permute.xlu0 %413
    %v426 = vunpack.c.l.b16 %v346
    %v427 = vunpack.c.l.b16 %v347
    %v428 = vunpack.c.l.b16 %v348
    %v429 = vunpack.c.l.b16 %v349
    %v430 = vunpack.c.l.b16 %v350
    %v431 = vunpack.c.l.b16 %v351
    %v432 = vunpack.c.l.b16 %v352
    %v433 = vunpack.c.l.b16 %v353
    %v434 = vunpack.c.l.b16 %v354
    %v435 = vunpack.c.l.b16 %v355
    %v436 = vpack.c.b16 %v427, %v426
    %v437 = vpack.c.b16 %v429, %v428
    %v438 = vpack.c.b16 %v431, %v430
    %v439 = vpack.c.b16 %v433, %v432
    %v440 = vpack.c.b16 %v435, %v434
    %446 = vmatprep.subr.bf16.mxu0 0
    %447 = vmatpush1.bf16.msra.mxu0 %v338
    %448 = vmatprep.subr.bf16.mxu0 0
    %449 = vmatpush1.bf16.msra.mxu0 %v339
    %450 = vmatprep.subr.bf16.mxu0 0
    %451 = vmatpush1.bf16.msra.mxu0 %v340
    %452 = vmatprep.subr.bf16.mxu0 0
    %453 = vmatpush1.bf16.msra.mxu0 %v341
    %454 = vmatprep.subr.bf16.mxu0 0
    %455 = vmatpush1.bf16.msra.mxu0 %v342
    %456 = vmatprep.subr.bf16.mxu0 0
    %457 = vmatpush1.bf16.msra.mxu0 %v343
    %458 = vmatprep.subr.bf16.mxu0 0
    %459 = vmatpush1.bf16.msra.mxu0 %v344
    %460 = vmatprep.subr.bf16.mxu0 0
    %461 = vmatpush1.bf16.msra.mxu0 %v345
    %462 = vmatprep.subr.bf16.mxu0 0
    %463 = vmatpush1.bf16.msra.mxu0 0
    %464 = vmatprep.subr.bf16.mxu0 0
    %465 = vmatpush1.bf16.msra.mxu0 0
    %466 = vmatprep.subr.bf16.mxu0 0
    %467 = vmatpush1.bf16.msra.mxu0 0
    %468 = vmatprep.subr.bf16.mxu0 0
    %469 = vmatpush1.bf16.msra.mxu0 0
    %470 = vmatprep.subr.bf16.mxu0 0
    %471 = vmatpush1.bf16.msra.mxu0 0
    %472 = vmatprep.subr.bf16.mxu0 0
    %473 = vmatpush1.bf16.msra.mxu0 0
    %474 = vmatprep.subr.bf16.mxu0 0
    %475 = vmatpush1.bf16.msra.mxu0 0
    %476 = vmatprep.subr.bf16.mxu0 0
    %477 = vmatpush1.bf16.msra.mxu0 0
    %478 = vmatprep.mubr.bf16.mxu0 0
    %479 = vmatmul.mubr.bf16.gmra.mrb[0].mxu0 %v436
    %v480 = vpop.f32.mrb[0].mxu0
    %v481 = vadd.f32 %v369, %v480
    %v482 = vpop.f32.mrb[0].mxu0
    %v483 = vpop.f32.mrb[0].mxu0
    %v484 = vadd.f32 %v374, %v483
    %v485 = vpop.f32.mrb[0].mxu0
    %486 = vmatprep.mubr.bf16.mxu0 0
    %487 = vmatmul.mubr.bf16.gmra.mrb[0].mxu0 %v437
    %v488 = vpop.f32.mrb[0].mxu0
    %v489 = vadd.f32 %v379, %v488
    %v490 = vpop.f32.mrb[0].mxu0
    %v491 = vpop.f32.mrb[0].mxu0
    %v492 = vadd.f32 %v384, %v491
    %v493 = vpop.f32.mrb[0].mxu0
    %494 = vmatprep.mubr.bf16.mxu0 0
    %495 = vmatmul.mubr.bf16.gmra.mrb[0].mxu0 %v438
    %v496 = vpop.f32.mrb[0].mxu0
    %v497 = vadd.f32 %v389, %v496
    %v498 = vpop.f32.mrb[0].mxu0
    %v499 = vpop.f32.mrb[0].mxu0
    %v500 = vadd.f32 %v394, %v499
    %v501 = vpop.f32.mrb[0].mxu0
    %502 = vmatprep.mubr.bf16.mxu0 0
    %503 = vmatmul.mubr.bf16.gmra.mrb[0].mxu0 %v439
    %v504 = vpop.f32.mrb[0].mxu0
    %v505 = vadd.f32 %v399, %v504
    %v506 = vpop.f32.mrb[0].mxu0
    %v507 = vpop.f32.mrb[0].mxu0
    %v508 = vadd.f32 %v404, %v507
    %v509 = vpop.f32.mrb[0].mxu0
    %510 = vmatprep.mubr.bf16.mxu0 0
    %511 = vmatmul.mubr.bf16.gmra.mrb[0].mxu0 %v440
    %v512 = vpop.f32.mrb[0].mxu0
    %v513 = vadd.f32 %v409, %v512
    %v514 = vpop.f32.mrb[0].mxu0
    %v515 = vpop.f32.mrb[0].mxu0
    %v516 = vadd.f32 %v414, %v515
    %v517 = vpop.f32.mrb[0].mxu0
    %518 = vdwg.mxu0
    %v519 = vmax.f32 %v481, 0.0
    %v520 = vmax.f32 %v484, 0.0
    %v521 = vmax.f32 %v489, 0.0
    %v522 = vmax.f32 %v492, 0.0
    %v523 = vmax.f32 %v497, 0.0
    %v524 = vmax.f32 %v500, 0.0
    %v525 = vmax.f32 %v505, 0.0
    %v526 = vmax.f32 %v508, 0.0
    %v527 = vmax.f32 %v513, 0.0
    %v528 = vmax.f32 %v516, 0.0
    %v529 = vpack.c.bf16 %v520, %v519
    %v530 = vpack.c.bf16 %v522, %v521
    %v531 = vpack.c.bf16 %v524, %v523
    %v532 = vpack.c.bf16 %v526, %v525
    %v533 = vpack.c.bf16 %v528, %v527
    %v534 = vld [vmem:[%s5] sm:$0xf]
    %v535 = vld [vmem:[%s5 + $0x4] sm:$0xf]
    %v536 = vld [vmem:[%s5 + $0x8] sm:$0xf]
    %v537 = vld [vmem:[%s5 + $0xc] sm:$0xf]
    %v538 = vld [vmem:[%s5 + $0x10] sm:$0xf]
    %v539 = vld [vmem:[%s5 + $0x14] sm:$0xf]
    %v540 = vld [vmem:[%s5 + $0x18] sm:$0xf]
    %v541 = vld [vmem:[%s5 + $0x1c] sm:$0xf]
    %v542 = vld [vmem:[%s6] sm:$0xff]
    %v543 = vld [vmem:[%s6 + $0x8] sm:$0xff]
    %v544 = vld [vmem:[%s6 + $0x10] sm:$0xff]
    %v545 = vld [vmem:[%s6 + $0x18] sm:$0xff]
    %v546 = vld [vmem:[%s6 + $0x20] sm:$0xff]
    %v547 = vld [vmem:[%s6 + $0x28] sm:$0xff]
    %v548 = vld [vmem:[%s6 + $0x30] sm:$0xff]
    %v549 = vld [vmem:[%s6 + $0x38] sm:$0xff]
    %551 = vset.pattern.permute.xlu0 0
    %552 = vperm.xlu0 %551, %v542
    %v553 = vpop.permute.xlu0 %552
    %556 = vset.pattern.permute.xlu0 0
    %557 = vperm.xlu0 %556, %v543
    %v558 = vpop.permute.xlu0 %557
    %561 = vset.pattern.permute.xlu0 0
    %562 = vperm.xlu0 %561, %v544
    %v563 = vpop.permute.xlu0 %562
    %566 = vset.pattern.permute.xlu0 0
    %567 = vperm.xlu0 %566, %v545
    %v568 = vpop.permute.xlu0 %567
    %571 = vset.pattern.permute.xlu0 0
    %572 = vperm.xlu0 %571, %v546
    %v573 = vpop.permute.xlu0 %572
    %576 = vset.pattern.permute.xlu0 0
    %577 = vperm.xlu0 %576, %v547
    %v578 = vpop.permute.xlu0 %577
    %581 = vset.pattern.permute.xlu0 0
    %582 = vperm.xlu0 %581, %v548
    %v583 = vpop.permute.xlu0 %582
    %586 = vset.pattern.permute.xlu0 0
    %587 = vperm.xlu0 %586, %v549
    %v588 = vpop.permute.xlu0 %587
    %v598 = vunpack.c.l.b16 %v534
    %v599 = vunpack.c.l.b16 %v535
    %v600 = vunpack.c.l.b16 %v536
    %v601 = vunpack.c.l.b16 %v537
    %v602 = vunpack.c.l.b16 %v538
    %v603 = vunpack.c.l.b16 %v539
    %v604 = vunpack.c.l.b16 %v540
    %v605 = vunpack.c.l.b16 %v541
    %v606 = vpack.c.b16 %v599, %v598
    %v607 = vpack.c.b16 %v601, %v600
    %v608 = vpack.c.b16 %v603, %v602
    %v609 = vpack.c.b16 %v605, %v604
    %vm610 = vcmask 654336
    %v612 = vsel %vm610, %v606, 0
    %v615 = vsel %vm610, %v607, 0
    %v618 = vsel %vm610, %v608, 0
    %v621 = vsel %vm610, %v609, 0
    %623 = vmatprep.subr.bf16.mxu0 0
    %624 = vmatpush1.bf16.msra.mxu0 %v529
    %625 = vmatprep.subr.bf16.mxu0 0
    %626 = vmatpush1.bf16.msra.mxu0 %v530
    %627 = vmatprep.subr.bf16.mxu0 0
    %628 = vmatpush1.bf16.msra.mxu0 %v531
    %629 = vmatprep.subr.bf16.mxu0 0
    %630 = vmatpush1.bf16.msra.mxu0 %v532
    %631 = vmatprep.subr.bf16.mxu0 0
    %632 = vmatpush1.bf16.msra.mxu0 %v533
    %633 = vmatprep.subr.bf16.mxu0 0
    %634 = vmatpush1.bf16.msra.mxu0 0
    %635 = vmatprep.subr.bf16.mxu0 0
    %636 = vmatpush1.bf16.msra.mxu0 0
    %637 = vmatprep.subr.bf16.mxu0 0
    %638 = vmatpush1.bf16.msra.mxu0 0
    %639 = vmatprep.subr.bf16.mxu0 0
    %640 = vmatpush1.bf16.msra.mxu0 0
    %641 = vmatprep.subr.bf16.mxu0 0
    %642 = vmatpush1.bf16.msra.mxu0 0
    %643 = vmatprep.subr.bf16.mxu0 0
    %644 = vmatpush1.bf16.msra.mxu0 0
    %645 = vmatprep.subr.bf16.mxu0 0
    %646 = vmatpush1.bf16.msra.mxu0 0
    %647 = vmatprep.subr.bf16.mxu0 0
    %648 = vmatpush1.bf16.msra.mxu0 0
    %649 = vmatprep.subr.bf16.mxu0 0
    %650 = vmatpush1.bf16.msra.mxu0 0
    %651 = vmatprep.subr.bf16.mxu0 0
    %652 = vmatpush1.bf16.msra.mxu0 0
    %653 = vmatprep.subr.bf16.mxu0 0
    %654 = vmatpush1.bf16.msra.mxu0 0
    %655 = vmatprep.mubr.bf16.mxu0 0
    %656 = vmatmul.mubr.bf16.gmra.mrb[0].mxu0 %v612
    %v657 = vpop.f32.mrb[0].mxu0
    %v658 = vadd.f32 %v553, %v657
    %v659 = vpop.f32.mrb[0].mxu0
    %v660 = vpop.f32.mrb[0].mxu0
    %v661 = vadd.f32 %v558, %v660
    %v662 = vpop.f32.mrb[0].mxu0
    %663 = vmatprep.mubr.bf16.mxu0 0
    %664 = vmatmul.mubr.bf16.gmra.mrb[0].mxu0 %v615
    %v665 = vpop.f32.mrb[0].mxu0
    %v666 = vadd.f32 %v563, %v665
    %v667 = vpop.f32.mrb[0].mxu0
    %v668 = vpop.f32.mrb[0].mxu0
    %v669 = vadd.f32 %v568, %v668
    %v670 = vpop.f32.mrb[0].mxu0
    %671 = vmatprep.mubr.bf16.mxu0 0
    %672 = vmatmul.mubr.bf16.gmra.mrb[0].mxu0 %v618
    %v673 = vpop.f32.mrb[0].mxu0
    %v674 = vadd.f32 %v573, %v673
    %v675 = vpop.f32.mrb[0].mxu0
    %v676 = vpop.f32.mrb[0].mxu0
    %v677 = vadd.f32 %v578, %v676
    %v678 = vpop.f32.mrb[0].mxu0
    %679 = vmatprep.mubr.bf16.mxu0 0
    %680 = vmatmul.mubr.bf16.gmra.mrb[0].mxu0 %v621
    %v681 = vpop.f32.mrb[0].mxu0
    %v682 = vadd.f32 %v583, %v681
    %v683 = vpop.f32.mrb[0].mxu0
    %v684 = vpop.f32.mrb[0].mxu0
    %v685 = vadd.f32 %v588, %v684
    %v686 = vpop.f32.mrb[0].mxu0
    %687 = vdwg.mxu0
    %v688 = vmax.f32 %v658, 0.0
    %v689 = vmax.f32 %v661, 0.0
    %v690 = vmax.f32 %v666, 0.0
    %v691 = vmax.f32 %v669, 0.0
    %v692 = vmax.f32 %v674, 0.0
    %v693 = vmax.f32 %v677, 0.0
    %v694 = vmax.f32 %v682, 0.0
    %v695 = vmax.f32 %v685, 0.0
    %v696 = vpack.c.bf16 %v689, %v688
    %v697 = vpack.c.bf16 %v691, %v690
    %v698 = vpack.c.bf16 %v693, %v692
    %v699 = vpack.c.bf16 %v695, %v694
    %v700 = vld [vmem:[%s7] sm:$0xf]
    %v701 = vld [vmem:[%s7 + $0x4] sm:$0xf]
    %v702 = vld [vmem:[%s8] sm:$0xff]
    %v703 = vld [vmem:[%s8 + $0x8] sm:$0xff]
    %705 = vset.pattern.permute.xlu0 0
    %706 = vperm.xlu0 %705, %v702
    %v707 = vpop.permute.xlu0 %706
    %710 = vset.pattern.permute.xlu0 0
    %711 = vperm.xlu0 %710, %v703
    %v712 = vpop.permute.xlu0 %711
    %v716 = vunpack.c.l.b16 %v700
    %v717 = vunpack.c.l.b16 %v701
    %v718 = vpack.c.b16 %v717, %v716
    %vm719 = vcmask 523264
    %v721 = vsel %vm719, %v718, 0
    %723 = vmatprep.subr.bf16.mxu0 0
    %724 = vmatpush1.bf16.msra.mxu0 %v696
    %725 = vmatprep.subr.bf16.mxu0 0
    %726 = vmatpush1.bf16.msra.mxu0 %v697
    %727 = vmatprep.subr.bf16.mxu0 0
    %728 = vmatpush1.bf16.msra.mxu0 %v698
    %729 = vmatprep.subr.bf16.mxu0 0
    %730 = vmatpush1.bf16.msra.mxu0 %v699
    %731 = vmatprep.subr.bf16.mxu0 0
    %732 = vmatpush1.bf16.msra.mxu0 0
    %733 = vmatprep.subr.bf16.mxu0 0
    %734 = vmatpush1.bf16.msra.mxu0 0
    %735 = vmatprep.subr.bf16.mxu0 0
    %736 = vmatpush1.bf16.msra.mxu0 0
    %737 = vmatprep.subr.bf16.mxu0 0
    %738 = vmatpush1.bf16.msra.mxu0 0
    %739 = vmatprep.subr.bf16.mxu0 0
    %740 = vmatpush1.bf16.msra.mxu0 0
    %741 = vmatprep.subr.bf16.mxu0 0
    %742 = vmatpush1.bf16.msra.mxu0 0
    %743 = vmatprep.subr.bf16.mxu0 0
    %744 = vmatpush1.bf16.msra.mxu0 0
    %745 = vmatprep.subr.bf16.mxu0 0
    %746 = vmatpush1.bf16.msra.mxu0 0
    %747 = vmatprep.subr.bf16.mxu0 0
    %748 = vmatpush1.bf16.msra.mxu0 0
    %749 = vmatprep.subr.bf16.mxu0 0
    %750 = vmatpush1.bf16.msra.mxu0 0
    %751 = vmatprep.subr.bf16.mxu0 0
    %752 = vmatpush1.bf16.msra.mxu0 0
    %753 = vmatprep.subr.bf16.mxu0 0
    %754 = vmatpush1.bf16.msra.mxu0 0
    %755 = vmatprep.mubr.bf16.mxu0 0
    %756 = vmatmul.mubr.bf16.gmra.mrb[0].mxu0 %v721
    %v757 = vpop.f32.mrb[0].mxu0
    %v758 = vadd.f32 %v707, %v757
    %v759 = vpop.f32.mrb[0].mxu0
    %v760 = vpop.f32.mrb[0].mxu0
    %v761 = vadd.f32 %v712, %v760
    %v762 = vpop.f32.mrb[0].mxu0
    %763 = vdwg.mxu0
    %v764 = vmax.f32 %v758, 0.0
    %v765 = vmax.f32 %v761, 0.0
    %v766 = vpack.c.bf16 %v765, %v764
    %v767 = vld [vmem:[%s9] sm:$0x3]
    %v768 = vld [vmem:[%s10] sm:$0xf]
    %770 = vset.pattern.permute.xlu0 0
    %771 = vperm.xlu0 %770, %v768
    %v772 = vpop.permute.xlu0 %771
    %vm774 = vcmask 130048
    %v776 = vsel %vm774, %v767, 0
    %778 = vmatprep.subr.bf16.mxu0 0
    %779 = vmatpush1.bf16.msra.mxu0 %v766
    %780 = vmatprep.subr.bf16.mxu0 0
    %781 = vmatpush1.bf16.msra.mxu0 0
    %782 = vmatprep.subr.bf16.mxu0 0
    %783 = vmatpush1.bf16.msra.mxu0 0
    %784 = vmatprep.subr.bf16.mxu0 0
    %785 = vmatpush1.bf16.msra.mxu0 0
    %786 = vmatprep.subr.bf16.mxu0 0
    %787 = vmatpush1.bf16.msra.mxu0 0
    %788 = vmatprep.subr.bf16.mxu0 0
    %789 = vmatpush1.bf16.msra.mxu0 0
    %790 = vmatprep.subr.bf16.mxu0 0
    %791 = vmatpush1.bf16.msra.mxu0 0
    %792 = vmatprep.subr.bf16.mxu0 0
    %793 = vmatpush1.bf16.msra.mxu0 0
    %794 = vmatprep.subr.bf16.mxu0 0
    %795 = vmatpush1.bf16.msra.mxu0 0
    %796 = vmatprep.subr.bf16.mxu0 0
    %797 = vmatpush1.bf16.msra.mxu0 0
    %798 = vmatprep.subr.bf16.mxu0 0
    %799 = vmatpush1.bf16.msra.mxu0 0
    %800 = vmatprep.subr.bf16.mxu0 0
    %801 = vmatpush1.bf16.msra.mxu0 0
    %802 = vmatprep.subr.bf16.mxu0 0
    %803 = vmatpush1.bf16.msra.mxu0 0
    %804 = vmatprep.subr.bf16.mxu0 0
    %805 = vmatpush1.bf16.msra.mxu0 0
    %806 = vmatprep.subr.bf16.mxu0 0
    %807 = vmatpush1.bf16.msra.mxu0 0
    %808 = vmatprep.subr.bf16.mxu0 0
    %809 = vmatpush1.bf16.msra.mxu0 0
    %810 = vmatprep.mubr.bf16.mxu0 0
    %811 = vmatmul.mubr.bf16.gmra.mrb[0].mxu0 %v776
    %v812 = vpop.f32.mrb[0].mxu0
    %v813 = vadd.f32 %v772, %v812
    %v814 = vpop.f32.mrb[0].mxu0
    %v815 = vpop.f32.mrb[0].mxu0
    %v816 = vpop.f32.mrb[0].mxu0
    %817 = vdwg.mxu0
    %v818 = vxor.u32 %v813, 2147483648
    %v819 = vmul.f32 %v818, 1.442695
    %v820 = vpow.pop %v819
    %v821 = vadd.f32 %v820, 1.0
    %v822 = vrcp.pop %v821
    %v823 = vmul.f32 1.0, %v822
    %824 = vst [vmem:[#allocation2] sm:$0xf] %v823
    // Predicated region
    $region46: #{tpu_custom_call.1} parent=1 // pred_check
      _
    $region47: #{tpu_custom_call.1} parent=1 // pred_check_branch
      %826 = sbr.rel (0) target = $region49
    $region48: #{tpu_custom_call.1} parent=1 // pred_region
      %s828 = ssub.s32 64, 64
      %829 = vsyncadd [#allocation3], %s828
      %s831 = sshll.u32 [#allocation2], 4
      %s832 = int_to_ptr.vmem [resolvable:$true] %s831
      %834 = dma.vmem_to_hbm [thread:$0]  %s832, 64, %s11, [#allocation3]
    $region49: #{tpu_custom_call.1} parent=1 // pred_fallthru
      _
    // Predicated region
    $region50: #{tpu_custom_call.1} parent=1 // pred_check
      _
    $region51: #{tpu_custom_call.1} parent=1 // pred_check_branch
      %836 = sbr.rel (0) target = $region53
    $region52: #{tpu_custom_call.1} parent=1 // pred_region
      %837 = dma.done [#allocation3], 64
    $region53: #{tpu_custom_call.1} parent=1 // pred_fallthru
      _
    %838 = vsyncpa [#allocation3], 1

</llo_original>
